<compile_context>
chip_gen: v7x
topology: tpu7x:2x2x1
jax: 0.10.0
libtpu: 0.0.40
codegen_flags: <defaults>
</compile_context>

<pallas_src>
import jax
import jax.numpy as jnp
from jax.experimental import pallas as pl
from jax.experimental.pallas import tpu as pltpu


def _round_up(x, m):
    return ((x + m - 1) // m) * m


def pos_mlp_kernel(x_ref, w1_ref, b1_ref, w2_ref, b2_ref, w3_ref, b3_ref, o_ref):
    """Fused 3-layer MLP on one (TM, F) row-tile. Everything f32."""
    x = x_ref[...]
    h1 = jnp.dot(x, w1_ref[...], preferred_element_type=jnp.float32) + b1_ref[...]
    h1 = jnp.maximum(h1, 0.0)                                        # ReLU

    h2 = jnp.dot(h1, w2_ref[...], preferred_element_type=jnp.float32) + b2_ref[...]
    h2 = jnp.maximum(h2, 0.0)                                        # ReLU

    pos = jnp.dot(h2, w3_ref[...], preferred_element_type=jnp.float32) + b3_ref[...]
    o_ref[...] = jnp.tanh(pos)                                        # Tanh


def generator_forward(beatmap_features, params, *, tm=4096):
    """Pallas-backed Generator.forward.

    beatmap_features: (batch, seq, input_size) float32
    returns:          (batch, seq, 2) float32
    """
    w1, b1, w2, b2, w3, b3 = params
    B, S, F = beatmap_features.shape
    H = w1.shape[1]
    OUT = w3.shape[1]

    M = B * S
    # Row tile: multiple of 8 (f32 sublane), shrink for tiny problems.
    tm_eff = min(tm, _round_up(M, 8))
    num_tiles = pl.cdiv(M, tm_eff)
    Mp = num_tiles * tm_eff

    x2d = beatmap_features.reshape(M, F)
    if Mp != M:
        # Row-only zero pad (no cast, no lane pad); padded rows are dropped below.
        x2d = jnp.pad(x2d, ((0, Mp - M), (0, 0)))

    # Advisory cost hint so XLA can overlap neighbours with this call.
    flops = 2 * M * (F * H + H * H + H * OUT)
    bytes_accessed = 4 * (Mp * F + Mp * OUT + F * H + H * H + H * OUT + 2 * H + OUT)
    cost = pl.CostEstimate(flops=flops, transcendentals=M * OUT,
                           bytes_accessed=bytes_accessed)

    out_p = pl.pallas_call(
        pos_mlp_kernel,
        out_shape=jax.ShapeDtypeStruct((Mp, OUT), jnp.float32),
        grid=(num_tiles,),
        in_specs=[
            pl.BlockSpec((tm_eff, F), lambda i: (i, 0)),   # x: streamed row-tiles
            # Weights/biases: constant index_map -> stay resident in VMEM
            # (Pallas skips re-DMA for blocks whose index doesn't change).
            pl.BlockSpec((F, H), lambda i: (0, 0)),         # w1
            pl.BlockSpec((1, H), lambda i: (0, 0)),         # b1
            pl.BlockSpec((H, H), lambda i: (0, 0)),         # w2
            pl.BlockSpec((1, H), lambda i: (0, 0)),         # b2
            pl.BlockSpec((H, OUT), lambda i: (0, 0)),       # w3
            pl.BlockSpec((1, OUT), lambda i: (0, 0)),       # b3
        ],
        out_specs=pl.BlockSpec((tm_eff, OUT), lambda i: (i, 0)),  # slim (tm, 2) writeback
        compiler_params=pltpu.CompilerParams(
            dimension_semantics=("parallel",),   # megacore split on v7x
        ),
        cost_estimate=cost,
    )(x2d, w1, b1, w2, b2, w3, b3)

    # Drop row padding; reshape back to (batch, seq, 2).
    return out_p[:M].reshape(B, S, OUT)


def init_params(key, input_size, hidden, out_dim=2):
    """Deterministic synthetic parameters (PyTorch Linear math, stored as (in, out))."""
    k1, k2, k3 = jax.random.split(key, 3)
    scale1 = 1.0 / jnp.sqrt(input_size)
    scale2 = 1.0 / jnp.sqrt(hidden)
    w1 = jax.random.uniform(k1, (input_size, hidden), jnp.float32, -scale1, scale1)
    b1 = jnp.zeros((1, hidden), jnp.float32)
    w2 = jax.random.uniform(k2, (hidden, hidden), jnp.float32, -scale2, scale2)
    b2 = jnp.zeros((1, hidden), jnp.float32)
    w3 = jax.random.uniform(k3, (hidden, out_dim), jnp.float32, -scale2, scale2)
    b3 = jnp.zeros((1, out_dim), jnp.float32)
    return (w1, b1, w2, b2, w3, b3)


if __name__ == "__main__":
    key = jax.random.PRNGKey(0)
    k_param, k_data = jax.random.split(key)

    batch, seq, input_size, hidden = 2, 8, 32, 64
    params = init_params(k_param, input_size, hidden)
    beatmap_features = jax.random.normal(k_data, (batch, seq, input_size), jnp.float32)

    pos = generator_forward(beatmap_features, params)
    pos = jax.block_until_ready(pos)

    # Pure-JAX f32 reference (original module math, no Pallas).
    w1, b1, w2, b2, w3, b3 = params
    x2d = beatmap_features.reshape(-1, input_size)
    h1 = jnp.maximum(x2d @ w1 + b1, 0.0)
    h2 = jnp.maximum(h1 @ w2 + b2, 0.0)
    ref = jnp.tanh(h2 @ w3 + b3).reshape(batch, seq, 2)

    assert pos.shape == (batch, seq, 2)
    max_err = float(jnp.max(jnp.abs(pos - ref)))
    # Kernel is full f32; tolerance covers default-precision matmul passes on
    # either side of the comparison.
    assert max_err < 2e-2, f"mismatch vs JAX reference: max abs err {max_err}"

    print("KERNEL_OK")
</pallas_src>

<mosaic_0001>
module attributes {stable_mosaic.version = 11 : i64} {
  func.func @pos_mlp_kernel(%arg0: i32, %arg1: memref<16x32xf32, #tpu.memory_space<vmem>>, %arg2: memref<32x64xf32, #tpu.memory_space<vmem>>, %arg3: memref<1x64xf32, #tpu.memory_space<vmem>>, %arg4: memref<64x64xf32, #tpu.memory_space<vmem>>, %arg5: memref<1x64xf32, #tpu.memory_space<vmem>>, %arg6: memref<64x2xf32, #tpu.memory_space<vmem>>, %arg7: memref<1x2xf32, #tpu.memory_space<vmem>>, %arg8: memref<16x2xf32, #tpu.memory_space<vmem>>) attributes {dimension_semantics = [#tpu.dimension_semantics<parallel>], iteration_bounds = array<i64: 1>, scalar_prefetch = 0 : i64, scratch_operands = 0 : i64, tpu.core_type = #tpu.core_type<tc>, window_params = [{transform_indices = @transform_0, window_bounds = array<i64: 16, 32>}, {pipeline_mode = #tpu.pipeline_mode<synchronous>, transform_indices = @transform_1, window_bounds = array<i64: 32, 64>}, {pipeline_mode = #tpu.pipeline_mode<synchronous>, transform_indices = @transform_2, window_bounds = array<i64: 1, 64>}, {pipeline_mode = #tpu.pipeline_mode<synchronous>, transform_indices = @transform_3, window_bounds = array<i64: 64, 64>}, {pipeline_mode = #tpu.pipeline_mode<synchronous>, transform_indices = @transform_4, window_bounds = array<i64: 1, 64>}, {pipeline_mode = #tpu.pipeline_mode<synchronous>, transform_indices = @transform_5, window_bounds = array<i64: 64, 2>}, {pipeline_mode = #tpu.pipeline_mode<synchronous>, transform_indices = @transform_6, window_bounds = array<i64: 1, 2>}, {transform_indices = @transform_7, window_bounds = array<i64: 16, 2>}]} {
    %c0 = arith.constant 0 : index
    %c0_0 = arith.constant 0 : index
    %0 = vector.load %arg1[%c0, %c0_0] : memref<16x32xf32, #tpu.memory_space<vmem>>, vector<16x32xf32>
    %c0_1 = arith.constant 0 : index
    %c0_2 = arith.constant 0 : index
    %1 = vector.load %arg2[%c0_1, %c0_2] : memref<32x64xf32, #tpu.memory_space<vmem>>, vector<32x64xf32>
    %cst = arith.constant dense<0.000000e+00> : vector<16x64xf32>
    %2 = tpu.matmul %0, %1, %cst {dimension_numbers = #tpu.dot_dimension_numbers<[1], [0], [0], [1], [0, 0, 1, 1], [], []>} : vector<16x32xf32>, vector<32x64xf32>, vector<16x64xf32> -> vector<16x64xf32>
    %c0_3 = arith.constant 0 : index
    %c0_4 = arith.constant 0 : index
    %3 = vector.load %arg3[%c0_3, %c0_4] : memref<1x64xf32, #tpu.memory_space<vmem>>, vector<1x64xf32>
    %4 = vector.broadcast %3 : vector<1x64xf32> to vector<16x64xf32>
    %5 = arith.addf %2, %4 : vector<16x64xf32>
    %cst_5 = arith.constant 0.000000e+00 : f32
    %6 = vector.broadcast %cst_5 : f32 to vector<16x64xf32>
    %7 = arith.maximumf %5, %6 : vector<16x64xf32>
    %c0_6 = arith.constant 0 : index
    %c0_7 = arith.constant 0 : index
    %8 = vector.load %arg4[%c0_6, %c0_7] : memref<64x64xf32, #tpu.memory_space<vmem>>, vector<64x64xf32>
    %cst_8 = arith.constant dense<0.000000e+00> : vector<16x64xf32>
    %9 = tpu.matmul %7, %8, %cst_8 {dimension_numbers = #tpu.dot_dimension_numbers<[1], [0], [0], [1], [0, 0, 1, 1], [], []>} : vector<16x64xf32>, vector<64x64xf32>, vector<16x64xf32> -> vector<16x64xf32>
    %c0_9 = arith.constant 0 : index
    %c0_10 = arith.constant 0 : index
    %10 = vector.load %arg5[%c0_9, %c0_10] : memref<1x64xf32, #tpu.memory_space<vmem>>, vector<1x64xf32>
    %11 = vector.broadcast %10 : vector<1x64xf32> to vector<16x64xf32>
    %12 = arith.addf %9, %11 : vector<16x64xf32>
    %cst_11 = arith.constant 0.000000e+00 : f32
    %13 = vector.broadcast %cst_11 : f32 to vector<16x64xf32>
    %14 = arith.maximumf %12, %13 : vector<16x64xf32>
    %c0_12 = arith.constant 0 : index
    %c0_13 = arith.constant 0 : index
    %15 = vector.load %arg6[%c0_12, %c0_13] : memref<64x2xf32, #tpu.memory_space<vmem>>, vector<64x2xf32>
    %cst_14 = arith.constant dense<0.000000e+00> : vector<16x2xf32>
    %16 = tpu.matmul %14, %15, %cst_14 {dimension_numbers = #tpu.dot_dimension_numbers<[1], [0], [0], [1], [0, 0, 1, 1], [], []>} : vector<16x64xf32>, vector<64x2xf32>, vector<16x2xf32> -> vector<16x2xf32>
    %c0_15 = arith.constant 0 : index
    %c0_16 = arith.constant 0 : index
    %17 = vector.load %arg7[%c0_15, %c0_16] : memref<1x2xf32, #tpu.memory_space<vmem>>, vector<1x2xf32>
    %18 = vector.broadcast %17 : vector<1x2xf32> to vector<16x2xf32>
    %19 = arith.addf %16, %18 : vector<16x2xf32>
    %20 = math.tanh %19 : vector<16x2xf32>
    %c0_17 = arith.constant 0 : index
    %c0_18 = arith.constant 0 : index
    %21 = vector.load %arg8[%c0_17, %c0_18] : memref<16x2xf32, #tpu.memory_space<vmem>>, vector<16x2xf32>
    tpu.vector_store %arg8[%c0_17, %c0_18], %20 {strides = array<i32>} : memref<16x2xf32, #tpu.memory_space<vmem>>, vector<16x2xf32>,
    return
  }
  func.func @transform_0(%arg0: i32) -> (i32, i32) {
    %c0_i32 = arith.constant 0 : i32
    %c0_i32_0 = arith.constant 0 : i32
    return %arg0, %c0_i32 : i32, i32
  }
  func.func @transform_1(%arg0: i32) -> (i32, i32) {
    %c0_i32 = arith.constant 0 : i32
    %c0_i32_0 = arith.constant 0 : i32
    %c0_i32_1 = arith.constant 0 : i32
    return %c0_i32, %c0_i32_0 : i32, i32
  }
  func.func @transform_2(%arg0: i32) -> (i32, i32) {
    %c0_i32 = arith.constant 0 : i32
    %c0_i32_0 = arith.constant 0 : i32
    %c0_i32_1 = arith.constant 0 : i32
    return %c0_i32, %c0_i32_0 : i32, i32
  }
  func.func @transform_3(%arg0: i32) -> (i32, i32) {
    %c0_i32 = arith.constant 0 : i32
    %c0_i32_0 = arith.constant 0 : i32
    %c0_i32_1 = arith.constant 0 : i32
    return %c0_i32, %c0_i32_0 : i32, i32
  }
  func.func @transform_4(%arg0: i32) -> (i32, i32) {
    %c0_i32 = arith.constant 0 : i32
    %c0_i32_0 = arith.constant 0 : i32
    %c0_i32_1 = arith.constant 0 : i32
    return %c0_i32, %c0_i32_0 : i32, i32
  }
  func.func @transform_5(%arg0: i32) -> (i32, i32) {
    %c0_i32 = arith.constant 0 : i32
    %c0_i32_0 = arith.constant 0 : i32
    %c0_i32_1 = arith.constant 0 : i32
    return %c0_i32, %c0_i32_0 : i32, i32
  }
  func.func @transform_6(%arg0: i32) -> (i32, i32) {
    %c0_i32 = arith.constant 0 : i32
    %c0_i32_0 = arith.constant 0 : i32
    %c0_i32_1 = arith.constant 0 : i32
    return %c0_i32, %c0_i32_0 : i32, i32
  }
  func.func @transform_7(%arg0: i32) -> (i32, i32) {
    %c0_i32 = arith.constant 0 : i32
    %c0_i32_0 = arith.constant 0 : i32
    return %arg0, %c0_i32 : i32, i32
  }
}

</mosaic_0001>

<llo_original>
// kernel: tpu_custom_call.1
$region0: #{tpu_custom_call.1}
  #allocation0 [shape = 'u32[]', space=smem, size = 0x4, offset = 0x4, fixed_abs, tag = 'smem constant byte address 0x4 - core index']
  #allocation1 [shape = 'u32[144,128]{1,0:T(1,128)}', space=vmem, size = 0x12000, scoped, tag = 'internal scratch']
  %s0 = inlined_call_operand.hbm [shape: f32[16,32], index: 0, kind: input, shape index: {}]
  %s1 = inlined_call_operand.hbm [shape: f32[32,64], index: 1, kind: input, shape index: {}]
  %s2 = inlined_call_operand.vmem [shape: f32[1,64], index: 2, kind: input, shape index: {}]
  %s3 = inlined_call_operand.vmem [shape: f32[64,64], index: 3, kind: input, shape index: {}]
  %s4 = inlined_call_operand.vmem [shape: f32[1,64], index: 4, kind: input, shape index: {}]
  %s5 = inlined_call_operand.vmem [shape: f32[64,2], index: 5, kind: input, shape index: {}]
  %s6 = inlined_call_operand.vmem [shape: f32[1,2], index: 6, kind: input, shape index: {}]
  %s7 = inlined_call_operand.vmem [shape: f32[16,2], index: 7, kind: output, shape index: {}]
  %s8 = sld [smem:[#allocation0]]
  $region46: #{tpu_custom_call.1} parent=0
    _
  %s10 = ssub.s32 1, %s8
  %s11 = scalar_select 0, %s10, %s8
  $region1: #{tpu_custom_call.1} parent=0
    #allocation2 [shape = 'u8[8192]{0}', space=vmem, size = 0x2000, scoped, tag = 'input window, operand 0, single buffered']
    #allocation3 [shape = 's32[1]{0}', space=sflag, size = 0x4, scoped, tag = 'scoped memory for tpu_custom_call.1']
    #allocation4 [shape = 'u8[16384]{0}', space=vmem, size = 0x4000, scoped, tag = 'input window, operand 1, single buffered']
    #allocation5 [shape = 's32[1]{0}', space=sflag, size = 0x4, scoped, tag = 'scoped memory for tpu_custom_call.1']
    %12 = vsyncpa [#allocation3], 0
    %13 = vsyncpa [#allocation5], 0
    // Predicated region
    $region2: #{tpu_custom_call.1} parent=1 // pred_check
      _
    $region3: #{tpu_custom_call.1} parent=1 // pred_check_branch
      %15 = sbr.rel (0) target = $region5
    $region4: #{tpu_custom_call.1} parent=1 // pred_region
      %s17 = ssub.s32 256, 256
      %18 = vsyncadd [#allocation3], %s17
      %s19 = sshll.u32 [#allocation2], 4
      %s20 = int_to_ptr.vmem [resolvable:$true] %s19
      %25 = dma.hbm_to_vmem [thread:$0]  %s0, 256, %s20, [#allocation3], 128, 128, 8
    $region5: #{tpu_custom_call.1} parent=1 // pred_fallthru
      _
    // Predicated region
    $region6: #{tpu_custom_call.1} parent=1 // pred_check
      _
    $region7: #{tpu_custom_call.1} parent=1 // pred_check_branch
      %27 = sbr.rel (0) target = $region9
    $region8: #{tpu_custom_call.1} parent=1 // pred_region
      %s29 = ssub.s32 512, 512
      %30 = vsyncadd [#allocation5], %s29
      %s31 = sshll.u32 [#allocation4], 4
      %s32 = int_to_ptr.vmem [resolvable:$true] %s31
      %37 = dma.hbm_to_vmem [thread:$0]  %s1, 512, %s32, [#allocation5], 128, 128, 8
    $region9: #{tpu_custom_call.1} parent=1 // pred_fallthru
      _
    // Predicated region
    $region10: #{tpu_custom_call.1} parent=1 // pred_check
      _
    $region11: #{tpu_custom_call.1} parent=1 // pred_check_branch
      %39 = sbr.rel (0) target = $region13
    $region12: #{tpu_custom_call.1} parent=1 // pred_region
      _
    $region13: #{tpu_custom_call.1} parent=1 // pred_fallthru
      _
    // Predicated region
    $region14: #{tpu_custom_call.1} parent=1 // pred_check
      _
    $region15: #{tpu_custom_call.1} parent=1 // pred_check_branch
      %41 = sbr.rel (0) target = $region17
    $region16: #{tpu_custom_call.1} parent=1 // pred_region
      _
    $region17: #{tpu_custom_call.1} parent=1 // pred_fallthru
      _
    // Predicated region
    $region18: #{tpu_custom_call.1} parent=1 // pred_check
      _
    $region19: #{tpu_custom_call.1} parent=1 // pred_check_branch
      %43 = sbr.rel (0) target = $region21
    $region20: #{tpu_custom_call.1} parent=1 // pred_region
      _
    $region21: #{tpu_custom_call.1} parent=1 // pred_fallthru
      _
    // Predicated region
    $region22: #{tpu_custom_call.1} parent=1 // pred_check
      _
    $region23: #{tpu_custom_call.1} parent=1 // pred_check_branch
      %45 = sbr.rel (0) target = $region25
    $region24: #{tpu_custom_call.1} parent=1 // pred_region
      _
    $region25: #{tpu_custom_call.1} parent=1 // pred_fallthru
      _
    // Predicated region
    $region26: #{tpu_custom_call.1} parent=1 // pred_check
      _
    $region27: #{tpu_custom_call.1} parent=1 // pred_check_branch
      %47 = sbr.rel (0) target = $region29
    $region28: #{tpu_custom_call.1} parent=1 // pred_region
      _
    $region29: #{tpu_custom_call.1} parent=1 // pred_fallthru
      _
    // Predicated region
    $region30: #{tpu_custom_call.1} parent=1 // pred_check
      _
    $region31: #{tpu_custom_call.1} parent=1 // pred_check_branch
      %49 = sbr.rel (0) target = $region33
    $region32: #{tpu_custom_call.1} parent=1 // pred_region
      %50 = dma.done [#allocation3], 256
    $region33: #{tpu_custom_call.1} parent=1 // pred_fallthru
      _
    // Predicated region
    $region34: #{tpu_custom_call.1} parent=1 // pred_check
      _
    $region35: #{tpu_custom_call.1} parent=1 // pred_check_branch
      %52 = sbr.rel (0) target = $region37
    $region36: #{tpu_custom_call.1} parent=1 // pred_region
      %53 = dma.done [#allocation5], 512
    $region37: #{tpu_custom_call.1} parent=1 // pred_fallthru
      _
    %v54 = vld [vmem:[#allocation2] sm:$0xff]
    %v55 = vld [vmem:[#allocation2 + $0x8] sm:$0xff]
    %v56 = vld [vmem:[#allocation4] sm:$0xff]
    %v57 = vld [vmem:[#allocation4 + $0x8] sm:$0xff]
    %v58 = vld [vmem:[#allocation4 + $0x10] sm:$0xff]
    %v59 = vld [vmem:[#allocation4 + $0x18] sm:$0xff]
    %v60 = vld [vmem:[%s2] sm:$0x1]
    %v62 = vlaneseq
    %v63 = vshrl.u32 %v62, 7
    %v64 = vsub.s32 0, %v63
    %v65 = vrot.slane %v60, %v64
    %vm67 = vcmask 261120
    %v69 = vsel %vm67, %v54, 0
    %v72 = vsel %vm67, %v55, 0
    %74 = vmatprep.subr.mxu0 0.0
    %75 = vmatpush1.msra.mxu0 %v56
    %76 = vmatprep.subr.mxu0 0.0
    %77 = vmatpush1.msra.mxu0 %v57
    %78 = vmatprep.subr.mxu0 0.0
    %79 = vmatpush1.msra.mxu0 %v58
    %80 = vmatprep.subr.mxu0 0.0
    %81 = vmatpush1.msra.mxu0 %v59
    %82 = vmatprep.subr.mxu0 0.0
    %83 = vmatpush1.msra.mxu0 0.0
    %84 = vmatprep.subr.mxu0 0.0
    %85 = vmatpush1.msra.mxu0 0.0
    %86 = vmatprep.subr.mxu0 0.0
    %87 = vmatpush1.msra.mxu0 0.0
    %88 = vmatprep.subr.mxu0 0.0
    %89 = vmatpush1.msra.mxu0 0.0
    %90 = vmatprep.subr.mxu0 0.0
    %91 = vmatpush1.msra.mxu0 0.0
    %92 = vmatprep.subr.mxu0 0.0
    %93 = vmatpush1.msra.mxu0 0.0
    %94 = vmatprep.subr.mxu0 0.0
    %95 = vmatpush1.msra.mxu0 0.0
    %96 = vmatprep.subr.mxu0 0.0
    %97 = vmatpush1.msra.mxu0 0.0
    %98 = vmatprep.subr.mxu0 0.0
    %99 = vmatpush1.msra.mxu0 0.0
    %100 = vmatprep.subr.mxu0 0.0
    %101 = vmatpush1.msra.mxu0 0.0
    %102 = vmatprep.subr.mxu0 0.0
    %103 = vmatpush1.msra.mxu0 0.0
    %104 = vmatprep.subr.mxu0 0.0
    %105 = vmatpush1.msra.mxu0 0.0
    %106 = vmatprep.subr.mxu0 0.0
    %107 = vmatpush1.msra.mxu0 0.0
    %108 = vmatprep.subr.mxu0 0.0
    %109 = vmatpush1.msra.mxu0 0.0
    %110 = vmatprep.subr.mxu0 0.0
    %111 = vmatpush1.msra.mxu0 0.0
    %112 = vmatprep.subr.mxu0 0.0
    %113 = vmatpush1.msra.mxu0 0.0
    %114 = vmatprep.subr.mxu0 0.0
    %115 = vmatpush1.msra.mxu0 0.0
    %116 = vmatprep.subr.mxu0 0.0
    %117 = vmatpush1.msra.mxu0 0.0
    %118 = vmatprep.subr.mxu0 0.0
    %119 = vmatpush1.msra.mxu0 0.0
    %120 = vmatprep.subr.mxu0 0.0
    %121 = vmatpush1.msra.mxu0 0.0
    %122 = vmatprep.subr.mxu0 0.0
    %123 = vmatpush1.msra.mxu0 0.0
    %124 = vmatprep.subr.mxu0 0.0
    %125 = vmatpush1.msra.mxu0 0.0
    %126 = vmatprep.subr.mxu0 0.0
    %127 = vmatpush1.msra.mxu0 0.0
    %128 = vmatprep.subr.mxu0 0.0
    %129 = vmatpush1.msra.mxu0 0.0
    %130 = vmatprep.subr.mxu0 0.0
    %131 = vmatpush1.msra.mxu0 0.0
    %132 = vmatprep.subr.mxu0 0.0
    %133 = vmatpush1.msra.mxu0 0.0
    %134 = vmatprep.subr.mxu0 0.0
    %135 = vmatpush1.msra.mxu0 0.0
    %136 = vmatprep.subr.mxu0 0.0
    %137 = vmatpush1.msra.mxu0 0.0
    %138 = vmatprep.mubr.f32.mxu0 0.0
    %139 = vmatmul.mubr.f32.gmra.mrb[0].mxu0 %v69
    %v140 = vpop.f32.mrb[0].mxu0
    %v141 = vadd.f32 %v65, %v140
    %v142 = vpop.f32.mrb[0].mxu0
    %143 = vmatprep.mubr.f32.mxu0 0.0
    %144 = vmatmul.mubr.f32.gmra.mrb[0].mxu0 %v72
    %v145 = vpop.f32.mrb[0].mxu0
    %v146 = vadd.f32 %v65, %v145
    %v147 = vpop.f32.mrb[0].mxu0
    %148 = vdwg.mxu0
    %v149 = vmax.f32 %v141, 0.0
    %v150 = vmax.f32 %v146, 0.0
    %v151 = vld [vmem:[%s3] sm:$0xff]
    %v152 = vld [vmem:[%s3 + $0x8] sm:$0xff]
    %v153 = vld [vmem:[%s3 + $0x10] sm:$0xff]
    %v154 = vld [vmem:[%s3 + $0x18] sm:$0xff]
    %v155 = vld [vmem:[%s3 + $0x20] sm:$0xff]
    %v156 = vld [vmem:[%s3 + $0x28] sm:$0xff]
    %v157 = vld [vmem:[%s3 + $0x30] sm:$0xff]
    %v158 = vld [vmem:[%s3 + $0x38] sm:$0xff]
    %v159 = vld [vmem:[%s4] sm:$0x1]
    %v161 = vlaneseq
    %v162 = vshrl.u32 %v161, 7
    %v163 = vsub.s32 0, %v162
    %v164 = vrot.slane %v159, %v163
    %vm166 = vcmask 523264
    %v168 = vsel %vm166, %v149, 0
    %v171 = vsel %vm166, %v150, 0
    %173 = vmatprep.subr.mxu0 0.0
    %174 = vmatpush1.msra.mxu0 %v151
    %175 = vmatprep.subr.mxu0 0.0
    %176 = vmatpush1.msra.mxu0 %v152
    %177 = vmatprep.subr.mxu0 0.0
    %178 = vmatpush1.msra.mxu0 %v153
    %179 = vmatprep.subr.mxu0 0.0
    %180 = vmatpush1.msra.mxu0 %v154
    %181 = vmatprep.subr.mxu0 0.0
    %182 = vmatpush1.msra.mxu0 %v155
    %183 = vmatprep.subr.mxu0 0.0
    %184 = vmatpush1.msra.mxu0 %v156
    %185 = vmatprep.subr.mxu0 0.0
    %186 = vmatpush1.msra.mxu0 %v157
    %187 = vmatprep.subr.mxu0 0.0
    %188 = vmatpush1.msra.mxu0 %v158
    %189 = vmatprep.subr.mxu0 0.0
    %190 = vmatpush1.msra.mxu0 0.0
    %191 = vmatprep.subr.mxu0 0.0
    %192 = vmatpush1.msra.mxu0 0.0
    %193 = vmatprep.subr.mxu0 0.0
    %194 = vmatpush1.msra.mxu0 0.0
    %195 = vmatprep.subr.mxu0 0.0
    %196 = vmatpush1.msra.mxu0 0.0
    %197 = vmatprep.subr.mxu0 0.0
    %198 = vmatpush1.msra.mxu0 0.0
    %199 = vmatprep.subr.mxu0 0.0
    %200 = vmatpush1.msra.mxu0 0.0
    %201 = vmatprep.subr.mxu0 0.0
    %202 = vmatpush1.msra.mxu0 0.0
    %203 = vmatprep.subr.mxu0 0.0
    %204 = vmatpush1.msra.mxu0 0.0
    %205 = vmatprep.subr.mxu0 0.0
    %206 = vmatpush1.msra.mxu0 0.0
    %207 = vmatprep.subr.mxu0 0.0
    %208 = vmatpush1.msra.mxu0 0.0
    %209 = vmatprep.subr.mxu0 0.0
    %210 = vmatpush1.msra.mxu0 0.0
    %211 = vmatprep.subr.mxu0 0.0
    %212 = vmatpush1.msra.mxu0 0.0
    %213 = vmatprep.subr.mxu0 0.0
    %214 = vmatpush1.msra.mxu0 0.0
    %215 = vmatprep.subr.mxu0 0.0
    %216 = vmatpush1.msra.mxu0 0.0
    %217 = vmatprep.subr.mxu0 0.0
    %218 = vmatpush1.msra.mxu0 0.0
    %219 = vmatprep.subr.mxu0 0.0
    %220 = vmatpush1.msra.mxu0 0.0
    %221 = vmatprep.subr.mxu0 0.0
    %222 = vmatpush1.msra.mxu0 0.0
    %223 = vmatprep.subr.mxu0 0.0
    %224 = vmatpush1.msra.mxu0 0.0
    %225 = vmatprep.subr.mxu0 0.0
    %226 = vmatpush1.msra.mxu0 0.0
    %227 = vmatprep.subr.mxu0 0.0
    %228 = vmatpush1.msra.mxu0 0.0
    %229 = vmatprep.subr.mxu0 0.0
    %230 = vmatpush1.msra.mxu0 0.0
    %231 = vmatprep.subr.mxu0 0.0
    %232 = vmatpush1.msra.mxu0 0.0
    %233 = vmatprep.subr.mxu0 0.0
    %234 = vmatpush1.msra.mxu0 0.0
    %235 = vmatprep.subr.mxu0 0.0
    %236 = vmatpush1.msra.mxu0 0.0
    %237 = vmatprep.mubr.f32.mxu0 0.0
    %238 = vmatmul.mubr.f32.gmra.mrb[0].mxu0 %v168
    %v239 = vpop.f32.mrb[0].mxu0
    %v240 = vadd.f32 %v164, %v239
    %v241 = vpop.f32.mrb[0].mxu0
    %242 = vmatprep.mubr.f32.mxu0 0.0
    %243 = vmatmul.mubr.f32.gmra.mrb[0].mxu0 %v171
    %v244 = vpop.f32.mrb[0].mxu0
    %v245 = vadd.f32 %v164, %v244
    %v246 = vpop.f32.mrb[0].mxu0
    %247 = vdwg.mxu0
    %v248 = vmax.f32 %v240, 0.0
    %v249 = vmax.f32 %v245, 0.0
    %v250 = vld [vmem:[%s5] sm:$0xff]
    %v251 = vld [vmem:[%s5 + $0x8] sm:$0xff]
    %v252 = vld [vmem:[%s5 + $0x10] sm:$0xff]
    %v253 = vld [vmem:[%s5 + $0x18] sm:$0xff]
    %v254 = vld [vmem:[%s5 + $0x20] sm:$0xff]
    %v255 = vld [vmem:[%s5 + $0x28] sm:$0xff]
    %v256 = vld [vmem:[%s5 + $0x30] sm:$0xff]
    %v257 = vld [vmem:[%s5 + $0x38] sm:$0xff]
    %v258 = vld [vmem:[%s6] sm:$0x1]
    %v260 = vlaneseq
    %v261 = vshrl.u32 %v260, 7
    %v262 = vsub.s32 0, %v261
    %v263 = vrot.slane %v258, %v262
    %v266 = vsel %vm166, %v248, 0
    %v269 = vsel %vm166, %v249, 0
    %271 = vmatprep.subr.mxu0 0.0
    %272 = vmatpush1.msra.mxu0 %v250
    %273 = vmatprep.subr.mxu0 0.0
    %274 = vmatpush1.msra.mxu0 %v251
    %275 = vmatprep.subr.mxu0 0.0
    %276 = vmatpush1.msra.mxu0 %v252
    %277 = vmatprep.subr.mxu0 0.0
    %278 = vmatpush1.msra.mxu0 %v253
    %279 = vmatprep.subr.mxu0 0.0
    %280 = vmatpush1.msra.mxu0 %v254
    %281 = vmatprep.subr.mxu0 0.0
    %282 = vmatpush1.msra.mxu0 %v255
    %283 = vmatprep.subr.mxu0 0.0
    %284 = vmatpush1.msra.mxu0 %v256
    %285 = vmatprep.subr.mxu0 0.0
    %286 = vmatpush1.msra.mxu0 %v257
    %287 = vmatprep.subr.mxu0 0.0
    %288 = vmatpush1.msra.mxu0 0.0
    %289 = vmatprep.subr.mxu0 0.0
    %290 = vmatpush1.msra.mxu0 0.0
    %291 = vmatprep.subr.mxu0 0.0
    %292 = vmatpush1.msra.mxu0 0.0
    %293 = vmatprep.subr.mxu0 0.0
    %294 = vmatpush1.msra.mxu0 0.0
    %295 = vmatprep.subr.mxu0 0.0
    %296 = vmatpush1.msra.mxu0 0.0
    %297 = vmatprep.subr.mxu0 0.0
    %298 = vmatpush1.msra.mxu0 0.0
    %299 = vmatprep.subr.mxu0 0.0
    %300 = vmatpush1.msra.mxu0 0.0
    %301 = vmatprep.subr.mxu0 0.0
    %302 = vmatpush1.msra.mxu0 0.0
    %303 = vmatprep.subr.mxu0 0.0
    %304 = vmatpush1.msra.mxu0 0.0
    %305 = vmatprep.subr.mxu0 0.0
    %306 = vmatpush1.msra.mxu0 0.0
    %307 = vmatprep.subr.mxu0 0.0
    %308 = vmatpush1.msra.mxu0 0.0
    %309 = vmatprep.subr.mxu0 0.0
    %310 = vmatpush1.msra.mxu0 0.0
    %311 = vmatprep.subr.mxu0 0.0
    %312 = vmatpush1.msra.mxu0 0.0
    %313 = vmatprep.subr.mxu0 0.0
    %314 = vmatpush1.msra.mxu0 0.0
    %315 = vmatprep.subr.mxu0 0.0
    %316 = vmatpush1.msra.mxu0 0.0
    %317 = vmatprep.subr.mxu0 0.0
    %318 = vmatpush1.msra.mxu0 0.0
    %319 = vmatprep.subr.mxu0 0.0
    %320 = vmatpush1.msra.mxu0 0.0
    %321 = vmatprep.subr.mxu0 0.0
    %322 = vmatpush1.msra.mxu0 0.0
    %323 = vmatprep.subr.mxu0 0.0
    %324 = vmatpush1.msra.mxu0 0.0
    %325 = vmatprep.subr.mxu0 0.0
    %326 = vmatpush1.msra.mxu0 0.0
    %327 = vmatprep.subr.mxu0 0.0
    %328 = vmatpush1.msra.mxu0 0.0
    %329 = vmatprep.subr.mxu0 0.0
    %330 = vmatpush1.msra.mxu0 0.0
    %331 = vmatprep.subr.mxu0 0.0
    %332 = vmatpush1.msra.mxu0 0.0
    %333 = vmatprep.subr.mxu0 0.0
    %334 = vmatpush1.msra.mxu0 0.0
    %335 = vmatprep.mubr.f32.mxu0 0.0
    %336 = vmatmul.mubr.f32.gmra.mrb[0].mxu0 %v266
    %v337 = vpop.f32.mrb[0].mxu0
    %v338 = vadd.f32 %v263, %v337
    %v339 = vpop.f32.mrb[0].mxu0
    %340 = vmatprep.mubr.f32.mxu0 0.0
    %341 = vmatmul.mubr.f32.gmra.mrb[0].mxu0 %v269
    %v342 = vpop.f32.mrb[0].mxu0
    %v343 = vadd.f32 %v263, %v342
    %v344 = vpop.f32.mrb[0].mxu0
    %345 = vdwg.mxu0
    %v346 = vtanh.pop %v338
    %v347 = vtanh.pop %v343
    %vm348 = vcmask 15360
    %349 = vst.msk [vmem:[%s7] sm:$0xff] %vm348, %v346
    %350 = vst.msk [vmem:[%s7 + $0x8] sm:$0xff] %vm348, %v347
    // Predicated region
    $region38: #{tpu_custom_call.1} parent=1 // pred_check
      _
    $region39: #{tpu_custom_call.1} parent=1 // pred_check_branch
      %352 = sbr.rel (0) target = $region41
    $region40: #{tpu_custom_call.1} parent=1 // pred_region
      _
    $region41: #{tpu_custom_call.1} parent=1 // pred_fallthru
      _
    // Predicated region
    $region42: #{tpu_custom_call.1} parent=1 // pred_check
      _
    $region43: #{tpu_custom_call.1} parent=1 // pred_check_branch
      %354 = sbr.rel (0) target = $region45
    $region44: #{tpu_custom_call.1} parent=1 // pred_region
      _
    $region45: #{tpu_custom_call.1} parent=1 // pred_fallthru
      _
    %355 = vsyncpa [#allocation3], 1
    %356 = vsyncpa [#allocation5], 1

</llo_original>
